<compile_context>
chip_gen: v5e
topology: v5e:2x2
jax: 0.10.0
libtpu: 0.0.40
codegen_flags: <defaults>
</compile_context>

<pallas_src>
from functools import partial

import jax
import jax.numpy as jnp
from jax.experimental import pallas as pl
from jax.experimental.pallas import tpu as pltpu

EMB_SIZE = 32          # module's EMB_SIZE constant (synthetic)
LN_EPS = 1e-5          # nn.LayerNorm default eps


def _round_up(x, m):
    return ((x + m - 1) // m) * m


def _path_value_kernel(s1_ref, s2_ref, w1_ref, w2_ref, b_ref, out_ref, *, layer_norm):
    """Fused ln1(on both inputs) + Linear(2E -> 1), one batch tile per grid step.

    Refs:
      s1_ref, s2_ref : (TILE_B, E)  VMEM input tiles
      w1_ref, w2_ref : (1, E)       VMEM, LN-affine-folded halves of the linear weight
      b_ref          : (1, 1)       SMEM, folded bias  b + beta . (w1 + w2)
      out_ref        : (TILE_B, 1)  VMEM output tile
    """
    w1 = w1_ref[...]
    w2 = w2_ref[...]

    def contrib(x, w):
        # sum_e LN(x)[e] * (gamma * w)[e], with the LN affine already folded into `w`.
        if layer_norm:
            mu = jnp.mean(x, axis=-1, keepdims=True)          # XLU lane reduce
            xc = x - mu
            var = jnp.mean(xc * xc, axis=-1, keepdims=True)   # XLU lane reduce
            rstd = jax.lax.rsqrt(var + LN_EPS)                # EUP
            # rstd is per-row, so pull it outside the weighted sum (saves a block mul).
            return jnp.sum(xc * w, axis=-1, keepdims=True) * rstd
        return jnp.sum(x * w, axis=-1, keepdims=True)

    out = contrib(s1_ref[...], w1) + contrib(s2_ref[...], w2) + b_ref[0, 0]
    out_ref[...] = out.astype(out_ref.dtype)


def path_value_net(s1, s2, params, *, layer_norm=True, tile_b=2048):
    """Wrapper: folds LN affine into the linear params, tiles the batch, calls Pallas.

    s1, s2: (B, EMB_SIZE) float32
    params: dict with 'ln1_gamma' (E,), 'ln1_beta' (E,), 'w' (1, 2E), 'b' (1,)
    """
    B, E = s1.shape
    assert s2.shape == (B, E)

    w = params["w"].astype(jnp.float32).reshape(2 * E)
    w1, w2 = w[:E], w[E:]
    b = params["b"].astype(jnp.float32).reshape(())

    if layer_norm:
        g = params["ln1_gamma"].astype(jnp.float32)
        be = params["ln1_beta"].astype(jnp.float32)
        w1f = (g * w1).reshape(1, E)
        w2f = (g * w2).reshape(1, E)
        bf = b + jnp.sum(be * (w1 + w2))       # beta folded into the bias
    else:
        w1f = w1.reshape(1, E)
        w2f = w2.reshape(1, E)
        bf = b
    bf = bf.reshape(1, 1)

    # Batch tiling: rows on sublanes, params resident across the grid.
    tb = min(_round_up(int(tile_b), 8), _round_up(B, 8))
    b_pad = _round_up(B, tb)
    if b_pad != B:
        # Remainder guard: zero-pad the final tile (LN of a zero row is finite); sliced away.
        pad = b_pad - B
        s1 = jnp.pad(s1, ((0, pad), (0, 0)))
        s2 = jnp.pad(s2, ((0, pad), (0, 0)))

    grid = (pl.cdiv(b_pad, tb),)
    x_spec = pl.BlockSpec((tb, E), lambda i: (i, 0))
    w_spec = pl.BlockSpec((1, E), lambda i: (0, 0))          # same block every step -> resident
    b_spec = pl.BlockSpec(memory_space=pltpu.MemorySpace.SMEM)

    out = pl.pallas_call(
        partial(_path_value_kernel, layer_norm=layer_norm),
        grid=grid,
        in_specs=[x_spec, x_spec, w_spec, w_spec, b_spec],
        out_specs=pl.BlockSpec((tb, 1), lambda i: (i, 0)),
        out_shape=jax.ShapeDtypeStruct((b_pad, 1), jnp.float32),
        compiler_params=pltpu.CompilerParams(
            dimension_semantics=("parallel",),               # megacore sharding on v7x
            vmem_limit_bytes=32 * 1024 * 1024,               # >> ~6 MiB actually needed
        ),
    )(s1.astype(jnp.float32), s2.astype(jnp.float32), w1f, w2f, bf)

    return out[:B]


def _reference(s1, s2, params, *, layer_norm=True):
    """Pure-JAX reference mirroring the PyTorch forward."""
    def ln(x, g, b):
        mu = jnp.mean(x, axis=-1, keepdims=True)
        var = jnp.mean((x - mu) ** 2, axis=-1, keepdims=True)
        return (x - mu) / jnp.sqrt(var + LN_EPS) * g + b

    if layer_norm:
        s1 = ln(s1, params["ln1_gamma"], params["ln1_beta"])
        s2 = ln(s2, params["ln1_gamma"], params["ln1_beta"])   # ln1 on both, as in reference
    cat = jnp.concatenate([s1, s2], axis=1)
    return cat @ params["w"].T + params["b"]


def init_params(key, emb_size=EMB_SIZE):
    k_w, k_b = jax.random.split(key)
    fan_in = emb_size * 2
    bound = 1.0 / jnp.sqrt(fan_in)
    return {
        # ln1 params (ln2 exists in the module but is unused in its forward)
        "ln1_gamma": jnp.ones((emb_size,), jnp.float32) * 1.1,
        "ln1_beta": jnp.full((emb_size,), 0.05, jnp.float32),
        "ln2_gamma": jnp.ones((emb_size,), jnp.float32),
        "ln2_beta": jnp.zeros((emb_size,), jnp.float32),
        # path_value_net: Linear(2E -> 1), PyTorch weight shape (1, 2E)
        "w": jax.random.uniform(k_w, (1, fan_in), jnp.float32, -bound, bound),
        "b": jax.random.uniform(k_b, (1,), jnp.float32, -bound, bound),
    }


if __name__ == "__main__":
    key = jax.random.PRNGKey(0)
    k1, k2, kp = jax.random.split(key, 3)
    params = init_params(kp)

    # Small shape (single tile).
    B = 8
    s1 = jax.random.normal(k1, (B, EMB_SIZE), jnp.float32)
    s2 = jax.random.normal(k2, (B, EMB_SIZE), jnp.float32)
    out = jax.block_until_ready(path_value_net(s1, s2, params, layer_norm=True))
    ref = _reference(s1, s2, params, layer_norm=True)
    assert out.shape == (B, 1), out.shape
    assert jnp.allclose(out, ref, atol=1e-5, rtol=1e-5), (out, ref)

    # Multi-tile grid + remainder padding.
    B2 = 300
    s1b = jax.random.normal(k1, (B2, EMB_SIZE), jnp.float32)
    s2b = jax.random.normal(k2, (B2, EMB_SIZE), jnp.float32)
    out2 = jax.block_until_ready(path_value_net(s1b, s2b, params, layer_norm=True, tile_b=128))
    ref2 = _reference(s1b, s2b, params, layer_norm=True)
    assert out2.shape == (B2, 1)
    assert jnp.allclose(out2, ref2, atol=1e-5, rtol=1e-5)

    # layer_norm=False path.
    out3 = jax.block_until_ready(path_value_net(s1b, s2b, params, layer_norm=False, tile_b=128))
    ref3 = _reference(s1b, s2b, params, layer_norm=False)
    assert jnp.allclose(out3, ref3, atol=1e-5, rtol=1e-5)

    print("KERNEL_OK")
</pallas_src>

<mosaic_0001>
module attributes {stable_mosaic.version = 11 : i64} {
  func.func @_path_value_kernel(%arg0: i32, %arg1: memref<8x32xf32, #tpu.memory_space<vmem>>, %arg2: memref<8x32xf32, #tpu.memory_space<vmem>>, %arg3: memref<1x32xf32, #tpu.memory_space<vmem>>, %arg4: memref<1x32xf32, #tpu.memory_space<vmem>>, %arg5: memref<1x1xf32, #tpu.memory_space<smem>>, %arg6: memref<8x1xf32, #tpu.memory_space<vmem>>) attributes {dimension_semantics = [#tpu.dimension_semantics<parallel>], iteration_bounds = array<i64: 1>, scalar_prefetch = 0 : i64, scratch_operands = 0 : i64, tpu.core_type = #tpu.core_type<tc>, window_params = [{transform_indices = @transform_0, window_bounds = array<i64: 8, 32>}, {transform_indices = @transform_1, window_bounds = array<i64: 8, 32>}, {pipeline_mode = #tpu.pipeline_mode<synchronous>, transform_indices = @transform_2, window_bounds = array<i64: 1, 32>}, {pipeline_mode = #tpu.pipeline_mode<synchronous>, transform_indices = @transform_3, window_bounds = array<i64: 1, 32>}, {transform_indices = @transform_4, window_bounds = array<i64: 1, 1>}, {transform_indices = @transform_5, window_bounds = array<i64: 8, 1>}]} {
    %c0 = arith.constant 0 : index
    %c0_0 = arith.constant 0 : index
    %0 = vector.load %arg3[%c0, %c0_0] : memref<1x32xf32, #tpu.memory_space<vmem>>, vector<1x32xf32>
    %c0_1 = arith.constant 0 : index
    %c0_2 = arith.constant 0 : index
    %1 = vector.load %arg4[%c0_1, %c0_2] : memref<1x32xf32, #tpu.memory_space<vmem>>, vector<1x32xf32>
    %c0_3 = arith.constant 0 : index
    %c0_4 = arith.constant 0 : index
    %2 = vector.load %arg1[%c0_3, %c0_4] : memref<8x32xf32, #tpu.memory_space<vmem>>, vector<8x32xf32>
    %cst = arith.constant dense<0.000000e+00> : vector<8xf32>
    %3 = vector.multi_reduction <add>, %2, %cst [1] : vector<8x32xf32> to vector<8xf32>
    %4 = vector.shape_cast %3 : vector<8xf32> to vector<8x1xf32>
    %cst_5 = arith.constant 3.200000e+01 : f32
    %5 = vector.broadcast %cst_5 : f32 to vector<8x1xf32>
    %6 = arith.divf %4, %5 : vector<8x1xf32>
    %7 = vector.broadcast %6 : vector<8x1xf32> to vector<8x32xf32>
    %8 = arith.subf %2, %7 : vector<8x32xf32>
    %9 = arith.mulf %8, %8 : vector<8x32xf32>
    %cst_6 = arith.constant dense<0.000000e+00> : vector<8xf32>
    %10 = vector.multi_reduction <add>, %9, %cst_6 [1] : vector<8x32xf32> to vector<8xf32>
    %11 = vector.shape_cast %10 : vector<8xf32> to vector<8x1xf32>
    %cst_7 = arith.constant 3.200000e+01 : f32
    %12 = vector.broadcast %cst_7 : f32 to vector<8x1xf32>
    %13 = arith.divf %11, %12 : vector<8x1xf32>
    %cst_8 = arith.constant 9.99999974E-6 : f32
    %14 = vector.broadcast %cst_8 : f32 to vector<8x1xf32>
    %15 = arith.addf %13, %14 : vector<8x1xf32>
    %16 = math.rsqrt %15 : vector<8x1xf32>
    %17 = vector.broadcast %0 : vector<1x32xf32> to vector<8x32xf32>
    %18 = arith.mulf %8, %17 : vector<8x32xf32>
    %cst_9 = arith.constant dense<0.000000e+00> : vector<8xf32>
    %19 = vector.multi_reduction <add>, %18, %cst_9 [1] : vector<8x32xf32> to vector<8xf32>
    %20 = vector.shape_cast %19 : vector<8xf32> to vector<8x1xf32>
    %21 = arith.mulf %20, %16 : vector<8x1xf32>
    %c0_10 = arith.constant 0 : index
    %c0_11 = arith.constant 0 : index
    %22 = vector.load %arg2[%c0_10, %c0_11] : memref<8x32xf32, #tpu.memory_space<vmem>>, vector<8x32xf32>
    %cst_12 = arith.constant dense<0.000000e+00> : vector<8xf32>
    %23 = vector.multi_reduction <add>, %22, %cst_12 [1] : vector<8x32xf32> to vector<8xf32>
    %24 = vector.shape_cast %23 : vector<8xf32> to vector<8x1xf32>
    %cst_13 = arith.constant 3.200000e+01 : f32
    %25 = vector.broadcast %cst_13 : f32 to vector<8x1xf32>
    %26 = arith.divf %24, %25 : vector<8x1xf32>
    %27 = vector.broadcast %26 : vector<8x1xf32> to vector<8x32xf32>
    %28 = arith.subf %22, %27 : vector<8x32xf32>
    %29 = arith.mulf %28, %28 : vector<8x32xf32>
    %cst_14 = arith.constant dense<0.000000e+00> : vector<8xf32>
    %30 = vector.multi_reduction <add>, %29, %cst_14 [1] : vector<8x32xf32> to vector<8xf32>
    %31 = vector.shape_cast %30 : vector<8xf32> to vector<8x1xf32>
    %cst_15 = arith.constant 3.200000e+01 : f32
    %32 = vector.broadcast %cst_15 : f32 to vector<8x1xf32>
    %33 = arith.divf %31, %32 : vector<8x1xf32>
    %cst_16 = arith.constant 9.99999974E-6 : f32
    %34 = vector.broadcast %cst_16 : f32 to vector<8x1xf32>
    %35 = arith.addf %33, %34 : vector<8x1xf32>
    %36 = math.rsqrt %35 : vector<8x1xf32>
    %37 = vector.broadcast %1 : vector<1x32xf32> to vector<8x32xf32>
    %38 = arith.mulf %28, %37 : vector<8x32xf32>
    %cst_17 = arith.constant dense<0.000000e+00> : vector<8xf32>
    %39 = vector.multi_reduction <add>, %38, %cst_17 [1] : vector<8x32xf32> to vector<8xf32>
    %40 = vector.shape_cast %39 : vector<8xf32> to vector<8x1xf32>
    %41 = arith.mulf %40, %36 : vector<8x1xf32>
    %42 = arith.addf %21, %41 : vector<8x1xf32>
    %c0_18 = arith.constant 0 : index
    %c0_19 = arith.constant 0 : index
    %43 = memref.load %arg5[%c0_18, %c0_19] : memref<1x1xf32, #tpu.memory_space<smem>>
    %44 = vector.broadcast %43 : f32 to vector<8x1xf32>
    %45 = arith.addf %42, %44 : vector<8x1xf32>
    %c0_20 = arith.constant 0 : index
    %c0_21 = arith.constant 0 : index
    %46 = vector.load %arg6[%c0_20, %c0_21] : memref<8x1xf32, #tpu.memory_space<vmem>>, vector<8x1xf32>
    tpu.vector_store %arg6[%c0_20, %c0_21], %45 {strides = array<i32>} : memref<8x1xf32, #tpu.memory_space<vmem>>, vector<8x1xf32>,
    return
  }
  func.func @transform_0(%arg0: i32) -> (i32, i32) {
    %c0_i32 = arith.constant 0 : i32
    %c0_i32_0 = arith.constant 0 : i32
    return %arg0, %c0_i32 : i32, i32
  }
  func.func @transform_1(%arg0: i32) -> (i32, i32) {
    %c0_i32 = arith.constant 0 : i32
    %c0_i32_0 = arith.constant 0 : i32
    return %arg0, %c0_i32 : i32, i32
  }
  func.func @transform_2(%arg0: i32) -> (i32, i32) {
    %c0_i32 = arith.constant 0 : i32
    %c0_i32_0 = arith.constant 0 : i32
    %c0_i32_1 = arith.constant 0 : i32
    return %c0_i32, %c0_i32_0 : i32, i32
  }
  func.func @transform_3(%arg0: i32) -> (i32, i32) {
    %c0_i32 = arith.constant 0 : i32
    %c0_i32_0 = arith.constant 0 : i32
    %c0_i32_1 = arith.constant 0 : i32
    return %c0_i32, %c0_i32_0 : i32, i32
  }
  func.func @transform_4(%arg0: i32) -> (i32, i32) {
    %c0_i32 = arith.constant 0 : i32
    %c0_i32_0 = arith.constant 0 : i32
    %c0_i32_1 = arith.constant 0 : i32
    return %c0_i32, %c0_i32_0 : i32, i32
  }
  func.func @transform_5(%arg0: i32) -> (i32, i32) {
    %c0_i32 = arith.constant 0 : i32
    %c0_i32_0 = arith.constant 0 : i32
    return %arg0, %c0_i32 : i32, i32
  }
}

</mosaic_0001>

<llo_original>
// kernel: tpu_custom_call.1
$region0: #{tpu_custom_call.1}
  #allocation0 [shape = 'u32[]', space=smem, size = 0x4, offset = 0x4, fixed_abs, tag = 'smem constant byte address 0x4 - core index']
  #allocation1 [shape = 'u32[72,128]{1,0:T(1,128)}', space=vmem, size = 0x9000, scoped, tag = 'internal scratch']
  #allocation2 [shape = 'f32[1,1]{1,0:T(1,128)S(6)}', space=smem, size = 0x200, scoped, tag = 'scoped memory for tpu_custom_call.1']
  %s0 = inlined_call_operand.hbm [shape: f32[8,32], index: 0, kind: input, shape index: {}]
  %s1 = inlined_call_operand.hbm [shape: f32[8,32], index: 1, kind: input, shape index: {}]
  %s2 = inlined_call_operand.vmem [shape: f32[1,32], index: 2, kind: input, shape index: {}]
  %s3 = inlined_call_operand.vmem [shape: f32[1,32], index: 3, kind: input, shape index: {}]
  %s4 = inlined_call_operand.<no memory space> [shape: f32[1,1], index: 4, kind: input, shape index: {}]
  %s5 = inlined_call_operand.vmem [shape: f32[8,1], index: 5, kind: output, shape index: {}]
  %s6 = sld [smem:[#allocation0]]
  $region38: #{tpu_custom_call.1} parent=0
    _
  %s8 = ssub.s32 1, %s6
  %s9 = scalar_select 0, %s8, %s6
  %10 = sst [smem:[#allocation2]] %s4
  $region1: #{tpu_custom_call.1} parent=0
    #allocation3 [shape = 'u8[4096]{0}', space=vmem, size = 0x1000, scoped, tag = 'input window, operand 0, single buffered']
    #allocation4 [shape = 's32[1]{0}', space=sflag, size = 0x4, scoped, tag = 'scoped memory for tpu_custom_call.1']
    #allocation5 [shape = 'u8[4096]{0}', space=vmem, size = 0x1000, scoped, tag = 'input window, operand 1, single buffered']
    #allocation6 [shape = 's32[1]{0}', space=sflag, size = 0x4, scoped, tag = 'scoped memory for tpu_custom_call.1']
    %11 = vsyncpa [#allocation4], 0
    %12 = vsyncpa [#allocation6], 0
    // Predicated region
    $region2: #{tpu_custom_call.1} parent=1 // pred_check
      _
    $region3: #{tpu_custom_call.1} parent=1 // pred_check_branch
      %14 = sbr.rel (0) target = $region5
    $region4: #{tpu_custom_call.1} parent=1 // pred_region
      %16 = vsyncadd [#allocation4], 0
      %s18 = sshll.u32 %s0, 4
      %s19 = int_to_ptr.hbm [resolvable:$true] %s18
      %s20 = sshll.u32 [#allocation3], 4
      %s21 = int_to_ptr.vmem [resolvable:$true] %s20
      %23 = dma.hbm_to_vmem [thread:$0]  %s19, 128, %s21, [#allocation4]
    $region5: #{tpu_custom_call.1} parent=1 // pred_fallthru
      _
    // Predicated region
    $region6: #{tpu_custom_call.1} parent=1 // pred_check
      _
    $region7: #{tpu_custom_call.1} parent=1 // pred_check_branch
      %25 = sbr.rel (0) target = $region9
    $region8: #{tpu_custom_call.1} parent=1 // pred_region
      %27 = vsyncadd [#allocation6], 0
      %s29 = sshll.u32 %s1, 4
      %s30 = int_to_ptr.hbm [resolvable:$true] %s29
      %s31 = sshll.u32 [#allocation5], 4
      %s32 = int_to_ptr.vmem [resolvable:$true] %s31
      %34 = dma.hbm_to_vmem [thread:$0]  %s30, 128, %s32, [#allocation6]
    $region9: #{tpu_custom_call.1} parent=1 // pred_fallthru
      _
    // Predicated region
    $region10: #{tpu_custom_call.1} parent=1 // pred_check
      _
    $region11: #{tpu_custom_call.1} parent=1 // pred_check_branch
      %36 = sbr.rel (0) target = $region13
    $region12: #{tpu_custom_call.1} parent=1 // pred_region
      _
    $region13: #{tpu_custom_call.1} parent=1 // pred_fallthru
      _
    // Predicated region
    $region14: #{tpu_custom_call.1} parent=1 // pred_check
      _
    $region15: #{tpu_custom_call.1} parent=1 // pred_check_branch
      %38 = sbr.rel (0) target = $region17
    $region16: #{tpu_custom_call.1} parent=1 // pred_region
      _
    $region17: #{tpu_custom_call.1} parent=1 // pred_fallthru
      _
    // Predicated region
    $region18: #{tpu_custom_call.1} parent=1 // pred_check
      _
    $region19: #{tpu_custom_call.1} parent=1 // pred_check_branch
      %40 = sbr.rel (0) target = $region21
    $region20: #{tpu_custom_call.1} parent=1 // pred_region
      _
    $region21: #{tpu_custom_call.1} parent=1 // pred_fallthru
      _
    // Predicated region
    $region22: #{tpu_custom_call.1} parent=1 // pred_check
      _
    $region23: #{tpu_custom_call.1} parent=1 // pred_check_branch
      %42 = sbr.rel (0) target = $region25
    $region24: #{tpu_custom_call.1} parent=1 // pred_region
      %44 = dma.done [#allocation4], 128
    $region25: #{tpu_custom_call.1} parent=1 // pred_fallthru
      _
    // Predicated region
    $region26: #{tpu_custom_call.1} parent=1 // pred_check
      _
    $region27: #{tpu_custom_call.1} parent=1 // pred_check_branch
      %46 = sbr.rel (0) target = $region29
    $region28: #{tpu_custom_call.1} parent=1 // pred_region
      %48 = dma.done [#allocation6], 128
    $region29: #{tpu_custom_call.1} parent=1 // pred_fallthru
      _
    %v49 = vld [vmem:[%s2] sm:$0x1]
    %v50 = vld [vmem:[%s3] sm:$0x1]
    %v51 = vld [vmem:[#allocation3] sm:$0xff]
    %vm52 = vcmask 261120
    %v53 = vsel %vm52, %v51, 0.0
    %54 = vadd.xlane.f32.xlu0 %v53
    %v55 = vpop.xlane.xlu0 %54
    %v56 = vrcp.pop 32.0
    %v57 = vmul.f32 32.0, %v56
    %v58 = vsub.f32 1.0, %v57
    %v59 = vmul.f32 %v56, %v58
    %v60 = vadd.f32 %v56, %v59
    %vm61 = vweird.f32 %v56
    %v62 = vsel %vm61, %v56, %v60
    %v63 = vmul.f32 %v55, %v62
    %v64 = vsub.f32 %v51, %v63
    %v65 = vmul.f32 %v64, %v64
    %v66 = vsel %vm52, %v65, 0.0
    %67 = vadd.xlane.f32.xlu0 %v66
    %v68 = vpop.xlane.xlu0 %67
    %v69 = vmul.f32 %v68, %v62
    %v70 = vadd.f32 %v69, 1e-05
    %v71 = vrsqrt.pop %v70
    %v72 = vmul.f32 %v71, %v70
    %v73 = vmul.f32 %v72, %v71
    %v74 = vmul.f32 0.5, %v73
    %v75 = vsub.f32 1.5, %v74
    %v76 = vmul.f32 %v71, %v75
    %vm77 = vweird.f32 %v70
    %vm78 = vweird.f32 %v71
    %vm79 = vmor %vm77, %vm78
    %v80 = vsel %vm79, %v71, %v76
    %v82 = vperm.slane %v49, 0
    %v84 = vmul.f32 %v64, %v82
    %v85 = vsel %vm52, %v84, 0.0
    %86 = vadd.xlane.f32.xlu0 %v85
    %v87 = vpop.xlane.xlu0 %86
    %v88 = vmul.f32 %v87, %v80
    %v89 = vld [vmem:[#allocation5] sm:$0xff]
    %v90 = vsel %vm52, %v89, 0.0
    %91 = vadd.xlane.f32.xlu0 %v90
    %v92 = vpop.xlane.xlu0 %91
    %v93 = vmul.f32 %v92, %v62
    %v94 = vsub.f32 %v89, %v93
    %v95 = vmul.f32 %v94, %v94
    %v96 = vsel %vm52, %v95, 0.0
    %97 = vadd.xlane.f32.xlu0 %v96
    %v98 = vpop.xlane.xlu0 %97
    %v99 = vmul.f32 %v98, %v62
    %v100 = vadd.f32 %v99, 1e-05
    %v101 = vrsqrt.pop %v100
    %v102 = vmul.f32 %v101, %v100
    %v103 = vmul.f32 %v102, %v101
    %v104 = vmul.f32 0.5, %v103
    %v105 = vsub.f32 1.5, %v104
    %v106 = vmul.f32 %v101, %v105
    %vm107 = vweird.f32 %v100
    %vm108 = vweird.f32 %v101
    %vm109 = vmor %vm107, %vm108
    %v110 = vsel %vm109, %v101, %v106
    %v112 = vperm.slane %v50, 0
    %v114 = vmul.f32 %v94, %v112
    %v115 = vsel %vm52, %v114, 0.0
    %116 = vadd.xlane.f32.xlu0 %v115
    %v117 = vpop.xlane.xlu0 %116
    %v118 = vmul.f32 %v117, %v110
    %v119 = vadd.f32 %v88, %v118
    %s120 = sld [smem:[#allocation2]]
    %v121 = vstv %s120
    %v122 = vadd.f32 %v119, %v121
    %vm123 = vcmask 7168
    %124 = vst.msk [vmem:[%s5] sm:$0xff] %vm123, %v122
    // Predicated region
    $region30: #{tpu_custom_call.1} parent=1 // pred_check
      _
    $region31: #{tpu_custom_call.1} parent=1 // pred_check_branch
      %126 = sbr.rel (0) target = $region33
    $region32: #{tpu_custom_call.1} parent=1 // pred_region
      _
    $region33: #{tpu_custom_call.1} parent=1 // pred_fallthru
      _
    // Predicated region
    $region34: #{tpu_custom_call.1} parent=1 // pred_check
      _
    $region35: #{tpu_custom_call.1} parent=1 // pred_check_branch
      %128 = sbr.rel (0) target = $region37
    $region36: #{tpu_custom_call.1} parent=1 // pred_region
      _
    $region37: #{tpu_custom_call.1} parent=1 // pred_fallthru
      _
    %129 = vsyncpa [#allocation4], 1
    %130 = vsyncpa [#allocation6], 1

</llo_original>
